<compile_context>
chip_gen: v5e
topology: v5e:2x2
jax: 0.10.0
libtpu: 0.0.40
codegen_flags: <defaults>
</compile_context>

<pallas_src>
import math

import jax
import jax.numpy as jnp
import numpy as np
from jax.experimental import pallas as pl
from jax.experimental.pallas import tpu as pltpu


def _identity_kernel(x_ref, o_ref):
    # Straight VMEM tile copy (elementwise identity).
    o_ref[...] = x_ref[...]


_LANE_CANDIDATES = (1024, 512, 256, 128)
# Byte budget per tile. 2 buffers each for input and output tiles
# => ~4 * 3 MiB = 12 MiB of VMEM, safely under v5e's 16 MiB scoped default
# and far under v6e (128 MiB) / v7x (64 MiB) physical VMEM.
_TILE_BYTES = 3 * 1024 * 1024


def _sublanes_for(dtype):
    # Native sublane packing: 32-bit -> 8, 16-bit -> 16, 8-bit -> 32.
    return {4: 8, 2: 16, 1: 32}.get(jnp.dtype(dtype).itemsize, 8)


def _pick_lanes(n_elem, sublanes):
    # Widest lane extent (multiple of 128) giving a lane-dense slab whose row
    # count is a whole number of native sublane groups (no pad needed).
    for lanes in _LANE_CANDIDATES:
        if n_elem % (lanes * sublanes) == 0:
            return lanes
    return None


def _tile_rows_for(rows, sublanes, lanes, itemsize):
    # Fixed cap-sized tile (byte-based), clamped to the slab height; the last
    # grid block may be partial -- no exact-divisor search.
    cap = (_TILE_BYTES // (lanes * itemsize)) // sublanes * sublanes
    cap = max(sublanes, cap)
    return min(cap, rows)


def _tiled_identity_copy(x2d, tile_rows, alias_input):
    rows, lanes = x2d.shape
    kwargs = {"input_output_aliases": {0: 0}} if alias_input else {}
    return pl.pallas_call(
        _identity_kernel,
        out_shape=jax.ShapeDtypeStruct((rows, lanes), x2d.dtype),
        grid_spec=pltpu.PrefetchScalarGridSpec(
            num_scalar_prefetch=0,
            grid=(pl.cdiv(rows, tile_rows),),
            in_specs=[pl.BlockSpec((tile_rows, lanes), lambda i: (i, 0))],
            out_specs=pl.BlockSpec((tile_rows, lanes), lambda i: (i, 0)),
        ),
        compiler_params=pltpu.CompilerParams(
            # Purely data-parallel copy: v7x's two TensorCores may split the
            # row tiles (halves per-step overhead); neutral on v5e / v6e.
            dimension_semantics=("parallel",),
        ),
        **kwargs,
    )(x2d)


def print_size_forward(x, *, materialize=False, donate=False):
    """Equivalent of PrintSize.forward: prints x.shape, returns x unchanged.

    materialize=False (default): pure identity -- no device work at all.
    materialize=True: dispatch a Pallas copy kernel producing a fresh buffer
      (or, with donate=True, one aliased onto a donated input buffer).
    """
    # TODO(synk): print is a Python-side (trace-time) effect; under jit
    # caching it fires once per trace, not per call like torch's print.
    print(x.shape)

    if not materialize:
        # Identity op: skipping the pallas_call avoids a full 1R+1W HBM pass.
        return x

    shape = x.shape
    n_elem = math.prod(shape)
    if n_elem == 0:
        return x

    itemsize = jnp.dtype(x.dtype).itemsize
    sublanes = _sublanes_for(x.dtype)
    lanes = _pick_lanes(n_elem, sublanes)
    if lanes is None:
        # Misaligned element count: a pad -> copy -> slice pipeline would cost
        # ~3x the HBM traffic of the aligned path for zero work, so keep the
        # exact identity instead.
        # TODO(synk): aligned-prefix copy + small-tail handling if a fresh
        # buffer is ever strictly required for misaligned shapes.
        return x

    rows = n_elem // lanes
    tile_rows = _tile_rows_for(rows, sublanes, lanes, itemsize)
    x2d = jnp.reshape(x, (rows, lanes))
    # Alias only under true donation; otherwise XLA would add a defensive
    # copy to satisfy the alias, making the "aliased" path slower.
    out2d = _tiled_identity_copy(x2d, tile_rows, alias_input=donate)
    return jnp.reshape(out2d, shape)


if __name__ == "__main__":
    key = jax.random.PRNGKey(0)
    # Small NCHW input consistent with a conv-pipeline debug module.
    x = jax.random.normal(key, (2, 4, 16, 16), dtype=jnp.float32)
    x_host = np.asarray(x).copy()

    # Default (recommended) path: pure identity, no kernel dispatch.
    y_id = print_size_forward(x)
    assert y_id is x

    # Materializing path: exercises the Pallas copy kernel once.
    y = print_size_forward(x, materialize=True)
    y = jax.block_until_ready(y)

    assert y.shape == x_host.shape
    assert y.dtype == x_host.dtype
    assert np.array_equal(np.asarray(y), x_host)
    assert np.array_equal(np.asarray(y_id), x_host)

    print("KERNEL_OK")
</pallas_src>

<mosaic_0001>
module attributes {stable_mosaic.version = 11 : i64} {
  func.func @_identity_kernel(%arg0: i32, %arg1: memref<8x256xf32, #tpu.memory_space<vmem>>, %arg2: memref<8x256xf32, #tpu.memory_space<vmem>>) attributes {dimension_semantics = [#tpu.dimension_semantics<parallel>], iteration_bounds = array<i64: 1>, scalar_prefetch = 0 : i64, scratch_operands = 0 : i64, tpu.core_type = #tpu.core_type<tc>, window_params = [{transform_indices = @transform_0, window_bounds = array<i64: 8, 256>}, {transform_indices = @transform_1, window_bounds = array<i64: 8, 256>}]} {
    %c0 = arith.constant 0 : index
    %c0_0 = arith.constant 0 : index
    %0 = vector.load %arg1[%c0, %c0_0] : memref<8x256xf32, #tpu.memory_space<vmem>>, vector<8x256xf32>
    %c0_1 = arith.constant 0 : index
    %c0_2 = arith.constant 0 : index
    %1 = vector.load %arg2[%c0_1, %c0_2] : memref<8x256xf32, #tpu.memory_space<vmem>>, vector<8x256xf32>
    tpu.vector_store %arg2[%c0_1, %c0_2], %0 {strides = array<i32>} : memref<8x256xf32, #tpu.memory_space<vmem>>, vector<8x256xf32>,
    return
  }
  func.func @transform_0(%arg0: i32) -> (i32, i32) {
    %c0_i32 = arith.constant 0 : i32
    %c0_i32_0 = arith.constant 0 : i32
    return %arg0, %c0_i32 : i32, i32
  }
  func.func @transform_1(%arg0: i32) -> (i32, i32) {
    %c0_i32 = arith.constant 0 : i32
    %c0_i32_0 = arith.constant 0 : i32
    return %arg0, %c0_i32 : i32, i32
  }
}

</mosaic_0001>

<llo_original>
// kernel: tpu_custom_call.1
$region0: #{tpu_custom_call.1}
  #allocation0 [shape = 'u32[]', space=smem, size = 0x4, offset = 0x4, fixed_abs, tag = 'smem constant byte address 0x4 - core index']
  #allocation1 [shape = 'u32[72,128]{1,0:T(1,128)}', space=vmem, size = 0x9000, scoped, tag = 'internal scratch']
  %s0 = inlined_call_operand.hbm [shape: f32[8,256], index: 0, kind: input, shape index: {}]
  %s1 = inlined_call_operand.hbm [shape: f32[8,256], index: 1, kind: output, shape index: {}]
  %s2 = sld [smem:[#allocation0]]
  $region18: #{tpu_custom_call.1} parent=0
    _
  %s4 = ssub.s32 1, %s2
  %s5 = scalar_select 0, %s4, %s2
  $region1: #{tpu_custom_call.1} parent=0
    #allocation2 [shape = 'u8[8192]{0}', space=vmem, size = 0x2000, scoped, tag = 'input window, operand 0, single buffered']
    #allocation3 [shape = 's32[1]{0}', space=sflag, size = 0x4, scoped, tag = 'scoped memory for tpu_custom_call.1']
    #allocation4 [shape = 's32[1]{0}', space=sflag, size = 0x4, scoped, tag = 'scoped memory for tpu_custom_call.1']
    #allocation5 [shape = 'u8[8192]{0}', space=vmem, size = 0x2000, scoped, tag = 'output window, operand 0, single buffered']
    %6 = vsyncpa [#allocation3], 0
    %7 = vsyncpa [#allocation4], 0
    // Predicated region
    $region2: #{tpu_custom_call.1} parent=1 // pred_check
      _
    $region3: #{tpu_custom_call.1} parent=1 // pred_check_branch
      %9 = sbr.rel (0) target = $region5
    $region4: #{tpu_custom_call.1} parent=1 // pred_region
      %11 = vsyncadd [#allocation3], 0
      %s13 = sshll.u32 %s0, 4
      %s14 = int_to_ptr.hbm [resolvable:$true] %s13
      %s15 = sshll.u32 [#allocation2], 4
      %s16 = int_to_ptr.vmem [resolvable:$true] %s15
      %18 = dma.hbm_to_vmem [thread:$0]  %s14, 256, %s16, [#allocation3]
    $region5: #{tpu_custom_call.1} parent=1 // pred_fallthru
      _
    // Predicated region
    $region6: #{tpu_custom_call.1} parent=1 // pred_check
      _
    $region7: #{tpu_custom_call.1} parent=1 // pred_check_branch
      %20 = sbr.rel (0) target = $region9
    $region8: #{tpu_custom_call.1} parent=1 // pred_region
      %22 = dma.done [#allocation3], 256
    $region9: #{tpu_custom_call.1} parent=1 // pred_fallthru
      _
    %v23 = vld [vmem:[#allocation2] sm:$0xff]
    %v24 = vld [vmem:[#allocation2 + $0x8] sm:$0xff]
    %25 = vst [vmem:[#allocation5] sm:$0xff] %v23
    %26 = vst [vmem:[#allocation5 + $0x8] sm:$0xff] %v24
    // Predicated region
    $region10: #{tpu_custom_call.1} parent=1 // pred_check
      _
    $region11: #{tpu_custom_call.1} parent=1 // pred_check_branch
      %28 = sbr.rel (0) target = $region13
    $region12: #{tpu_custom_call.1} parent=1 // pred_region
      %30 = vsyncadd [#allocation4], 0
      %s32 = sshll.u32 [#allocation5], 4
      %s33 = int_to_ptr.vmem [resolvable:$true] %s32
      %s34 = sshll.u32 %s1, 4
      %s35 = int_to_ptr.hbm [resolvable:$true] %s34
      %37 = dma.vmem_to_hbm [thread:$0]  %s33, 256, %s35, [#allocation4]
    $region13: #{tpu_custom_call.1} parent=1 // pred_fallthru
      _
    // Predicated region
    $region14: #{tpu_custom_call.1} parent=1 // pred_check
      _
    $region15: #{tpu_custom_call.1} parent=1 // pred_check_branch
      %39 = sbr.rel (0) target = $region17
    $region16: #{tpu_custom_call.1} parent=1 // pred_region
      %41 = dma.done [#allocation4], 256
    $region17: #{tpu_custom_call.1} parent=1 // pred_fallthru
      _
    %42 = vsyncpa [#allocation3], 1
    %43 = vsyncpa [#allocation4], 1

</llo_original>
